<compile_context>
chip_gen: v5e
topology: v5e:2x2
jax: 0.10.0
libtpu: 0.0.40
codegen_flags: <defaults>
</compile_context>

<pallas_src>
import jax
import jax.numpy as jnp
from jax import lax
from jax.experimental import pallas as pl
from jax.experimental.pallas import tpu as pltpu


def t1_kernel(x_ref, t_ref, w_ref, out_ref):
    Bp = t_ref.shape[0]              # padded batch (multiple of 8)
    SB, H = x_ref.shape              # time-major flattened input (S*Bp, H)
    S = SB // Bp
    H2 = 2 * H
    f32 = jnp.float32
    cdt = w_ref.dtype                # MXU operand dtype (bf16 fast path / f32 check path)

    # Static, 8-row-aligned views into the packed weight slab (9H, 2H).
    wx    = w_ref[0 * H:1 * H, :]            # (H, 2H)   [w_ih0 | 0]
    wblk  = w_ref[1 * H:3 * H, :]            # (2H, 2H)  [[w_hh0, w_ih1], [0, w_hh1]]
    whead = w_ref[4 * H:7 * H, 0:H]          # (3H, H)   [0 ; w1h ; w1t]  (fc1 fused head)
    w2f   = w_ref[7 * H:8 * H, 0:H]          # (H, H)    BN1-folded fc2 (padded)
    w3f   = w_ref[8 * H:9 * H, 0:H]          # (H, H)    BN2-folded fc3 (padded)

    brow  = w_ref[3 * H + 0:3 * H + 1, :].astype(f32)     # (1, 2H)  [b0 | b1]
    bfc1  = w_ref[3 * H + 1:3 * H + 2, 0:H].astype(f32)   # (1, H)
    bfc2  = w_ref[3 * H + 2:3 * H + 3, 0:H].astype(f32)   # (1, H)   BN1-folded
    bfc3  = w_ref[3 * H + 3:3 * H + 4, 0:H].astype(f32)   # (1, H)   BN2-folded

    # Hoisted per-step drive (one throughput matmul, off the serial path):
    #   xpb[s] = [ x[s] @ w_ih0 + b0  |  b1 ]        shape (S*Bp, 2H), f32.
    xpb = jnp.dot(x_ref[...], wx, preferred_element_type=f32) + brow

    # Skewed fused recurrence.  state_k = [h1[k] | h2[k-1]]:
    #   seed  : state_0 = [tanh(xp[0]) | 0]               (h1[-1] = h2[-1] = 0)
    #   step k: state_{k+1} = tanh(state_k @ Wblk + [xp[k+1] | b1])
    #           -> h1 half = h1[k+1],  h2 half = h2[k]
    # After S steps the h2 half holds h2[S-1]; the h1 half is dead (discarded).
    lane = lax.broadcasted_iota(jnp.int32, (Bp, H2), 1)
    state = jnp.tanh(jnp.where(lane < H, xpb[0:Bp, :], 0.0))          # (Bp, 2H) f32
    for k in range(S):
        r0 = min(k + 1, S - 1) * Bp        # last step: in-bounds filler, h1 half unused
        state = jnp.tanh(
            jnp.dot(state.astype(cdt), wblk, preferred_element_type=f32)
            + xpb[r0:r0 + Bp, :])

    # AppendTime: one-hot(t) expressed as extra matmul rows, fused with fc1:
    #   y = [h1* | h2 | onehot] @ [0 ; w1h ; w1t] + bfc1
    # (whead's first H rows are zero, so the dead h1 half never contributes;
    #  w1t rows NT..H-1 are zero, so the H-deep one-hot equals a depth-NT one.)
    onehot = (lax.broadcasted_iota(jnp.int32, (Bp, H), 1) == t_ref[...]).astype(f32)
    head_in = jnp.concatenate([state, onehot], axis=1)                # (Bp, 3H)

    # fc1 -> ReLU -> (BN1 folded into fc2) -> ReLU -> (BN2 folded into fc3).
    # dropout(p=0.2) layers are identity in eval mode.
    y = jnp.dot(head_in.astype(cdt), whead, preferred_element_type=f32) + bfc1
    y = jnp.maximum(y, 0.0)
    y = jnp.dot(y.astype(cdt), w2f, preferred_element_type=f32) + bfc2
    y = jnp.maximum(y, 0.0)
    y = jnp.dot(y.astype(cdt), w3f, preferred_element_type=f32) + bfc3    # (Bp, H)
    out_ref[...] = y


def pack_params(p, dtype=jnp.bfloat16):
    """Fold eval-mode BN into fc2/fc3, build the fused recurrence / head
    blocks, and pack everything into one zero-padded (9H, 2H) slab."""
    (w_ih0, w_hh0, b0, w_ih1, w_hh1, b1,
     w1h, w1t, bfc1, bn1s, bn1b,
     w2, bfc2, bn2s, bn2b, w3, bfc3) = p
    H = w_ih0.shape[0]
    H2 = 2 * H
    NT = w1t.shape[0]
    assert NT <= H and H % 8 == 0

    def pad2(a, rows, cols):
        return jnp.pad(a, ((0, rows - a.shape[0]), (0, cols - a.shape[1])))

    # Fold BatchNorm (eval) into the *downstream* linears:
    #   (relu(y)*s + b) @ W + c  ==  relu(y) @ (diag(s) @ W) + (b @ W + c)
    w2f = bn1s.reshape(-1, 1) * w2                  # (5, 5)
    bfc2f = bn1b @ w2 + bfc2                        # (1, 5)
    w3f = bn2s.reshape(-1, 1) * w3                  # (5, 3)
    bfc3f = bn2b @ w3 + bfc3                        # (1, 3)

    zH = jnp.zeros((H, H), jnp.float32)
    wx = jnp.concatenate([w_ih0, zH], axis=1)                       # (H, 2H)
    wblk = jnp.concatenate([
        jnp.concatenate([w_hh0, w_ih1], axis=1),
        jnp.concatenate([zH, w_hh1], axis=1),
    ], axis=0)                                                      # (2H, 2H)
    w_head = jnp.concatenate(
        [zH, pad2(w1h, H, H), pad2(w1t, H, H)], axis=0)             # (3H, H)

    bias_blk = jnp.zeros((H, H2), jnp.float32)
    bias_blk = bias_blk.at[0, 0:H].set(b0[0])
    bias_blk = bias_blk.at[0, H:H2].set(b1[0])
    bias_blk = bias_blk.at[1, 0:bfc1.shape[1]].set(bfc1[0])
    bias_blk = bias_blk.at[2, 0:bfc2f.shape[1]].set(bfc2f[0])
    bias_blk = bias_blk.at[3, 0:bfc3f.shape[1]].set(bfc3f[0])

    slab = jnp.concatenate([
        wx,                              # rows 0H:1H
        wblk,                            # rows 1H:3H
        bias_blk,                        # rows 3H:4H
        pad2(w_head, 3 * H, H2),         # rows 4H:7H
        pad2(w2f, H, H2),                # rows 7H:8H
        pad2(w3f, H, H2),                # rows 8H:9H
    ], axis=0)
    return slab.astype(dtype)


def t1_forward(x, t, slab, out_features=3):
    """x: (B, S, H) float32, t: (B,) int, slab: packed params (9H, 2H).

    Batch is padded to a multiple of 8 so every per-timestep slice is a full
    (8,128) tile.  (For throughput, callers should batch many sequences per
    call — B up to ~128 (v5e) / 256 (v6e/v7x) is essentially free per step.)
    """
    B, S, H = x.shape
    Bp = ((B + 7) // 8) * 8
    cdt = slab.dtype

    x_tm = jnp.transpose(x, (1, 0, 2))                       # time-major (S, B, H)
    x_tm = jnp.pad(x_tm, ((0, 0), (0, Bp - B), (0, 0)))      # (S, Bp, H)
    x_tm = x_tm.reshape(S * Bp, H).astype(cdt)               # MXU operand dtype
    t_p = jnp.pad(t.astype(jnp.int32), (0, Bp - B)).reshape(Bp, 1)

    vmem = pl.BlockSpec(memory_space=pltpu.MemorySpace.VMEM)
    y = pl.pallas_call(
        t1_kernel,
        out_shape=jax.ShapeDtypeStruct((Bp, H), jnp.float32),
        in_specs=[vmem, vmem, vmem],
        out_specs=vmem,
    )(x_tm, t_p, slab)
    return y[:B, :out_features]


def init_params(key, H, NT):
    """Deterministic init mimicking PyTorch defaults (uniform +/- 1/sqrt(fan_in))."""
    ks = list(jax.random.split(key, 14))

    def u(k, shape, fan_in):
        b = 1.0 / (fan_in ** 0.5)
        return jax.random.uniform(k, shape, jnp.float32, -b, b)

    # nn.RNN(input=H, hidden=H, layers=2).  PyTorch stores W as (hidden, in);
    # we pass the transpose (in, out) and fold b_ih + b_hh into one bias row.
    w_ih0 = u(ks[0], (H, H), H).T
    w_hh0 = u(ks[1], (H, H), H).T
    b0 = (u(ks[2], (H,), H) + u(ks[3], (H,), H)).reshape(1, H)
    w_ih1 = u(ks[4], (H, H), H).T
    w_hh1 = u(ks[5], (H, H), H).T
    b1 = (u(ks[6], (H,), H) + u(ks[7], (H,), H)).reshape(1, H)

    # fc1: Linear(12 -> 5) split into hidden-state part and one-hot part.
    W1 = u(ks[8], (5, H + NT), H + NT)
    bfc1 = u(ks[9], (5,), H + NT).reshape(1, 5)
    w1h = W1[:, :H].T                                    # (H, 5)
    w1t = W1[:, H:].T                                    # (NT, 5)

    w2 = u(ks[10], (5, 5), 5).T
    bfc2 = u(ks[11], (5,), 5).reshape(1, 5)
    w3 = u(ks[12], (3, 5), 5).T
    bfc3 = u(ks[13], (3,), 5).reshape(1, 3)

    # BatchNorm1d(5) eval-mode: (gamma, beta, running stats) -> scale/shift.
    eps = 1e-5
    gamma = jnp.ones((5,), jnp.float32); beta = jnp.zeros((5,), jnp.float32)
    rmean = jnp.zeros((5,), jnp.float32); rvar = jnp.ones((5,), jnp.float32)
    scale = gamma / jnp.sqrt(rvar + eps)
    shift = beta - rmean * scale
    bn1s = scale.reshape(1, 5); bn1b = shift.reshape(1, 5)
    bn2s = bn1s; bn2b = bn1b

    return (w_ih0, w_hh0, b0, w_ih1, w_hh1, b1,
            w1h, w1t, bfc1, bn1s, bn1b,
            w2, bfc2, bn2s, bn2b, w3, bfc3)


def t1_reference(x, t, p):
    """Pure-JAX reference of the eval-mode forward (unfused / unfolded)."""
    (w_ih0, w_hh0, b0, w_ih1, w_hh1, b1,
     w1h, w1t, bfc1, bn1s, bn1b,
     w2, bfc2, bn2s, bn2b, w3, bfc3) = p
    B, S, H = x.shape
    NT = w1t.shape[0]
    h1 = jnp.zeros((B, H), jnp.float32)
    h2 = jnp.zeros((B, H), jnp.float32)
    for s in range(S):
        x_s = x[:, s, :]
        h1 = jnp.tanh(x_s @ w_ih0 + h1 @ w_hh0 + b0)
        h2 = jnp.tanh(h1 @ w_ih1 + h2 @ w_hh1 + b1)
    onehot = jax.nn.one_hot(t, NT, dtype=jnp.float32)
    y = h2 @ w1h + onehot @ w1t + bfc1
    y = jnp.maximum(y, 0.0) * bn1s + bn1b
    y = jnp.maximum(y @ w2 + bfc2, 0.0) * bn2s + bn2b
    return y @ w3 + bfc3


if __name__ == "__main__":
    # num_input=8, num_timesteps=4 -> fc1 input = 8 + 4 = 12 (matches nn.Linear(12, 5))
    B, S, H, NT = 2, 8, 8, 4
    key = jax.random.PRNGKey(0)
    kx, kt, kp = jax.random.split(key, 3)
    x = jax.random.normal(kx, (B, S, H), jnp.float32)
    t = jax.random.randint(kt, (B,), 0, NT, dtype=jnp.int32)
    params = init_params(kp, H, NT)
    ref = t1_reference(x, t, params)

    # f32-slab path: validates the fused-recurrence / BN-folding / packing
    # structure exactly against the f32 reference.
    out_f32 = jax.block_until_ready(t1_forward(x, t, pack_params(params, jnp.float32)))
    assert out_f32.shape == (B, 3), out_f32.shape
    assert jnp.allclose(out_f32, ref, atol=1e-4, rtol=1e-4), (out_f32, ref)

    # bf16-MXU fast path (production config): same structure, single-pass MXU.
    # Loose tolerance only guards against gross errors — expected drift is the
    # bf16 operand quantization (~1e-2); exact numerics are covered above.
    out_bf16 = jax.block_until_ready(t1_forward(x, t, pack_params(params, jnp.bfloat16)))
    assert out_bf16.shape == (B, 3), out_bf16.shape
    assert jnp.allclose(out_bf16, ref, atol=1e-1, rtol=1e-1), (out_bf16, ref)

    print("KERNEL_OK")
</pallas_src>

<mosaic_0001>
module attributes {stable_mosaic.version = 11 : i64} {
  func.func @t1_kernel(%arg0: memref<64x8xf32, #tpu.memory_space<vmem>>, %arg1: memref<8x1xi32, #tpu.memory_space<vmem>>, %arg2: memref<72x16xf32, #tpu.memory_space<vmem>>, %arg3: memref<8x8xf32, #tpu.memory_space<vmem>>) attributes {dimension_semantics = [], scalar_prefetch = 0 : i64, scratch_operands = 0 : i64, tpu.core_type = #tpu.core_type<tc>} {
    %c0 = arith.constant 0 : index
    %c0_0 = arith.constant 0 : index
    %0 = vector.load %arg2[%c0, %c0_0] : memref<72x16xf32, #tpu.memory_space<vmem>>, vector<8x16xf32>
    %c8 = arith.constant 8 : index
    %c0_1 = arith.constant 0 : index
    %1 = vector.load %arg2[%c8, %c0_1] : memref<72x16xf32, #tpu.memory_space<vmem>>, vector<16x16xf32>
    %c32 = arith.constant 32 : index
    %c0_2 = arith.constant 0 : index
    %2 = vector.load %arg2[%c32, %c0_2] : memref<72x16xf32, #tpu.memory_space<vmem>>, vector<24x8xf32>
    %c56 = arith.constant 56 : index
    %c0_3 = arith.constant 0 : index
    %3 = vector.load %arg2[%c56, %c0_3] : memref<72x16xf32, #tpu.memory_space<vmem>>, vector<8x8xf32>
    %c64 = arith.constant 64 : index
    %c0_4 = arith.constant 0 : index
    %4 = vector.load %arg2[%c64, %c0_4] : memref<72x16xf32, #tpu.memory_space<vmem>>, vector<8x8xf32>
    %c24 = arith.constant 24 : index
    %c0_5 = arith.constant 0 : index
    %5 = vector.load %arg2[%c24, %c0_5] : memref<72x16xf32, #tpu.memory_space<vmem>>, vector<1x16xf32>
    %c25 = arith.constant 25 : index
    %c0_6 = arith.constant 0 : index
    %6 = vector.load %arg2[%c25, %c0_6] : memref<72x16xf32, #tpu.memory_space<vmem>>, vector<1x8xf32>
    %c26 = arith.constant 26 : index
    %c0_7 = arith.constant 0 : index
    %7 = vector.load %arg2[%c26, %c0_7] : memref<72x16xf32, #tpu.memory_space<vmem>>, vector<1x8xf32>
    %c27 = arith.constant 27 : index
    %c0_8 = arith.constant 0 : index
    %8 = vector.load %arg2[%c27, %c0_8] : memref<72x16xf32, #tpu.memory_space<vmem>>, vector<1x8xf32>
    %c0_9 = arith.constant 0 : index
    %c0_10 = arith.constant 0 : index
    %9 = vector.load %arg0[%c0_9, %c0_10] : memref<64x8xf32, #tpu.memory_space<vmem>>, vector<64x8xf32>
    %cst = arith.constant dense<0.000000e+00> : vector<64x16xf32>
    %10 = tpu.matmul %9, %0, %cst {dimension_numbers = #tpu.dot_dimension_numbers<[1], [0], [0], [1], [0, 0, 1, 1], [], []>} : vector<64x8xf32>, vector<8x16xf32>, vector<64x16xf32> -> vector<64x16xf32>
    %11 = vector.broadcast %5 : vector<1x16xf32> to vector<64x16xf32>
    %12 = arith.addf %10, %11 : vector<64x16xf32>
    %13 = tpu.iota {dimensions = array<i32: 1>} : vector<8x16xi32>
    %c8_i32 = arith.constant 8 : i32
    %14 = vector.broadcast %c8_i32 : i32 to vector<8x16xi32>
    %15 = arith.cmpi slt, %13, %14 : vector<8x16xi32>
    %16 = vector.extract_strided_slice %12 {offsets = [0, 0], sizes = [8, 16], strides = [1, 1]} : vector<64x16xf32> to vector<8x16xf32>
    %cst_11 = arith.constant 0.000000e+00 : f32
    %17 = vector.broadcast %cst_11 : f32 to vector<8x16xf32>
    %18 = arith.select %15, %16, %17 : vector<8x16xi1>, vector<8x16xf32>
    %19 = math.tanh %18 : vector<8x16xf32>
    %cst_12 = arith.constant dense<0.000000e+00> : vector<8x16xf32>
    %20 = tpu.matmul %19, %1, %cst_12 {dimension_numbers = #tpu.dot_dimension_numbers<[1], [0], [0], [1], [0, 0, 1, 1], [], []>} : vector<8x16xf32>, vector<16x16xf32>, vector<8x16xf32> -> vector<8x16xf32>
    %21 = vector.extract_strided_slice %12 {offsets = [8, 0], sizes = [8, 16], strides = [1, 1]} : vector<64x16xf32> to vector<8x16xf32>
    %22 = arith.addf %20, %21 : vector<8x16xf32>
    %23 = math.tanh %22 : vector<8x16xf32>
    %cst_13 = arith.constant dense<0.000000e+00> : vector<8x16xf32>
    %24 = tpu.matmul %23, %1, %cst_13 {dimension_numbers = #tpu.dot_dimension_numbers<[1], [0], [0], [1], [0, 0, 1, 1], [], []>} : vector<8x16xf32>, vector<16x16xf32>, vector<8x16xf32> -> vector<8x16xf32>
    %25 = vector.extract_strided_slice %12 {offsets = [16, 0], sizes = [8, 16], strides = [1, 1]} : vector<64x16xf32> to vector<8x16xf32>
    %26 = arith.addf %24, %25 : vector<8x16xf32>
    %27 = math.tanh %26 : vector<8x16xf32>
    %cst_14 = arith.constant dense<0.000000e+00> : vector<8x16xf32>
    %28 = tpu.matmul %27, %1, %cst_14 {dimension_numbers = #tpu.dot_dimension_numbers<[1], [0], [0], [1], [0, 0, 1, 1], [], []>} : vector<8x16xf32>, vector<16x16xf32>, vector<8x16xf32> -> vector<8x16xf32>
    %29 = vector.extract_strided_slice %12 {offsets = [24, 0], sizes = [8, 16], strides = [1, 1]} : vector<64x16xf32> to vector<8x16xf32>
    %30 = arith.addf %28, %29 : vector<8x16xf32>
    %31 = math.tanh %30 : vector<8x16xf32>
    %cst_15 = arith.constant dense<0.000000e+00> : vector<8x16xf32>
    %32 = tpu.matmul %31, %1, %cst_15 {dimension_numbers = #tpu.dot_dimension_numbers<[1], [0], [0], [1], [0, 0, 1, 1], [], []>} : vector<8x16xf32>, vector<16x16xf32>, vector<8x16xf32> -> vector<8x16xf32>
    %33 = vector.extract_strided_slice %12 {offsets = [32, 0], sizes = [8, 16], strides = [1, 1]} : vector<64x16xf32> to vector<8x16xf32>
    %34 = arith.addf %32, %33 : vector<8x16xf32>
    %35 = math.tanh %34 : vector<8x16xf32>
    %cst_16 = arith.constant dense<0.000000e+00> : vector<8x16xf32>
    %36 = tpu.matmul %35, %1, %cst_16 {dimension_numbers = #tpu.dot_dimension_numbers<[1], [0], [0], [1], [0, 0, 1, 1], [], []>} : vector<8x16xf32>, vector<16x16xf32>, vector<8x16xf32> -> vector<8x16xf32>
    %37 = vector.extract_strided_slice %12 {offsets = [40, 0], sizes = [8, 16], strides = [1, 1]} : vector<64x16xf32> to vector<8x16xf32>
    %38 = arith.addf %36, %37 : vector<8x16xf32>
    %39 = math.tanh %38 : vector<8x16xf32>
    %cst_17 = arith.constant dense<0.000000e+00> : vector<8x16xf32>
    %40 = tpu.matmul %39, %1, %cst_17 {dimension_numbers = #tpu.dot_dimension_numbers<[1], [0], [0], [1], [0, 0, 1, 1], [], []>} : vector<8x16xf32>, vector<16x16xf32>, vector<8x16xf32> -> vector<8x16xf32>
    %41 = vector.extract_strided_slice %12 {offsets = [48, 0], sizes = [8, 16], strides = [1, 1]} : vector<64x16xf32> to vector<8x16xf32>
    %42 = arith.addf %40, %41 : vector<8x16xf32>
    %43 = math.tanh %42 : vector<8x16xf32>
    %cst_18 = arith.constant dense<0.000000e+00> : vector<8x16xf32>
    %44 = tpu.matmul %43, %1, %cst_18 {dimension_numbers = #tpu.dot_dimension_numbers<[1], [0], [0], [1], [0, 0, 1, 1], [], []>} : vector<8x16xf32>, vector<16x16xf32>, vector<8x16xf32> -> vector<8x16xf32>
    %45 = vector.extract_strided_slice %12 {offsets = [56, 0], sizes = [8, 16], strides = [1, 1]} : vector<64x16xf32> to vector<8x16xf32>
    %46 = arith.addf %44, %45 : vector<8x16xf32>
    %47 = math.tanh %46 : vector<8x16xf32>
    %cst_19 = arith.constant dense<0.000000e+00> : vector<8x16xf32>
    %48 = tpu.matmul %47, %1, %cst_19 {dimension_numbers = #tpu.dot_dimension_numbers<[1], [0], [0], [1], [0, 0, 1, 1], [], []>} : vector<8x16xf32>, vector<16x16xf32>, vector<8x16xf32> -> vector<8x16xf32>
    %49 = vector.extract_strided_slice %12 {offsets = [56, 0], sizes = [8, 16], strides = [1, 1]} : vector<64x16xf32> to vector<8x16xf32>
    %50 = arith.addf %48, %49 : vector<8x16xf32>
    %51 = math.tanh %50 : vector<8x16xf32>
    %52 = tpu.iota {dimensions = array<i32: 1>} : vector<8x8xi32>
    %c0_20 = arith.constant 0 : index
    %c0_21 = arith.constant 0 : index
    %53 = vector.load %arg1[%c0_20, %c0_21] : memref<8x1xi32, #tpu.memory_space<vmem>>, vector<8x1xi32>
    %54 = vector.broadcast %53 : vector<8x1xi32> to vector<8x8xi32>
    %55 = arith.cmpi eq, %52, %54 : vector<8x8xi32>
    %56 = arith.extui %55 : vector<8x8xi1> to vector<8x8xi32>
    %57 = arith.sitofp %56 : vector<8x8xi32> to vector<8x8xf32>
    %58 = tpu.concatenate %51, %57 in 1 : vector<8x16xf32>, vector<8x8xf32> -> vector<8x24xf32>
    %cst_22 = arith.constant dense<0.000000e+00> : vector<8x8xf32>
    %59 = tpu.matmul %58, %2, %cst_22 {dimension_numbers = #tpu.dot_dimension_numbers<[1], [0], [0], [1], [0, 0, 1, 1], [], []>} : vector<8x24xf32>, vector<24x8xf32>, vector<8x8xf32> -> vector<8x8xf32>
    %60 = vector.broadcast %6 : vector<1x8xf32> to vector<8x8xf32>
    %61 = arith.addf %59, %60 : vector<8x8xf32>
    %cst_23 = arith.constant 0.000000e+00 : f32
    %62 = vector.broadcast %cst_23 : f32 to vector<8x8xf32>
    %63 = arith.maximumf %61, %62 : vector<8x8xf32>
    %cst_24 = arith.constant dense<0.000000e+00> : vector<8x8xf32>
    %64 = tpu.matmul %63, %3, %cst_24 {dimension_numbers = #tpu.dot_dimension_numbers<[1], [0], [0], [1], [0, 0, 1, 1], [], []>} : vector<8x8xf32>, vector<8x8xf32>, vector<8x8xf32> -> vector<8x8xf32>
    %65 = vector.broadcast %7 : vector<1x8xf32> to vector<8x8xf32>
    %66 = arith.addf %64, %65 : vector<8x8xf32>
    %cst_25 = arith.constant 0.000000e+00 : f32
    %67 = vector.broadcast %cst_25 : f32 to vector<8x8xf32>
    %68 = arith.maximumf %66, %67 : vector<8x8xf32>
    %cst_26 = arith.constant dense<0.000000e+00> : vector<8x8xf32>
    %69 = tpu.matmul %68, %4, %cst_26 {dimension_numbers = #tpu.dot_dimension_numbers<[1], [0], [0], [1], [0, 0, 1, 1], [], []>} : vector<8x8xf32>, vector<8x8xf32>, vector<8x8xf32> -> vector<8x8xf32>
    %70 = vector.broadcast %8 : vector<1x8xf32> to vector<8x8xf32>
    %71 = arith.addf %69, %70 : vector<8x8xf32>
    %c0_27 = arith.constant 0 : index
    %c0_28 = arith.constant 0 : index
    %72 = vector.load %arg3[%c0_27, %c0_28] : memref<8x8xf32, #tpu.memory_space<vmem>>, vector<8x8xf32>
    tpu.vector_store %arg3[%c0_27, %c0_28], %71 {strides = array<i32>} : memref<8x8xf32, #tpu.memory_space<vmem>>, vector<8x8xf32>,
    return
  }
}

</mosaic_0001>

<llo_original>
// kernel: tpu_custom_call.1
$region0: #{tpu_custom_call.1}
  #allocation0 [shape = 'u32[]', space=smem, size = 0x4, offset = 0x4, fixed_abs, tag = 'smem constant byte address 0x4 - core index']
  #allocation1 [shape = 'u32[72,128]{1,0:T(1,128)}', space=vmem, size = 0x9000, scoped, tag = 'internal scratch']
  %s0 = inlined_call_operand.vmem [shape: f32[64,8], index: 0, kind: input, shape index: {}]
  %s1 = inlined_call_operand.vmem [shape: s32[8,1], index: 1, kind: input, shape index: {}]
  %s2 = inlined_call_operand.vmem [shape: f32[72,16], index: 2, kind: input, shape index: {}]
  %s3 = inlined_call_operand.hbm [shape: f32[8,8], index: 3, kind: output, shape index: {}]
  %s4 = sld [smem:[#allocation0]]
  $region22: #{tpu_custom_call.1} parent=0
    _
  %s6 = ssub.s32 1, %s4
  %s7 = scalar_select 0, %s6, %s4
  $region1: #{tpu_custom_call.1} parent=0
    #allocation2 [shape = 'u8[4096]{0}', space=vmem, size = 0x1000, scoped, tag = 'output window, operand 0, single buffered']
    #allocation3 [shape = 's32[1]{0}', space=sflag, size = 0x4, scoped, tag = 'scoped memory for tpu_custom_call.1']
    %8 = vsyncpa [#allocation3], 0
    // Predicated region
    $region2: #{tpu_custom_call.1} parent=1 // pred_check
      _
    $region3: #{tpu_custom_call.1} parent=1 // pred_check_branch
      %10 = sbr.rel (0) target = $region5
    $region4: #{tpu_custom_call.1} parent=1 // pred_region
      _
    $region5: #{tpu_custom_call.1} parent=1 // pred_fallthru
      _
    // Predicated region
    $region6: #{tpu_custom_call.1} parent=1 // pred_check
      _
    $region7: #{tpu_custom_call.1} parent=1 // pred_check_branch
      %12 = sbr.rel (0) target = $region9
    $region8: #{tpu_custom_call.1} parent=1 // pred_region
      _
    $region9: #{tpu_custom_call.1} parent=1 // pred_fallthru
      _
    // Predicated region
    $region10: #{tpu_custom_call.1} parent=1 // pred_check
      _
    $region11: #{tpu_custom_call.1} parent=1 // pred_check_branch
      %14 = sbr.rel (0) target = $region13
    $region12: #{tpu_custom_call.1} parent=1 // pred_region
      _
    $region13: #{tpu_custom_call.1} parent=1 // pred_fallthru
      _
    %v15 = vld [vmem:[%s2] sm:$0xff]
    %v16 = vld [vmem:[%s2 + $0x8] sm:$0xff]
    %v17 = vld [vmem:[%s2 + $0x10] sm:$0xff]
    %v18 = vld [vmem:[%s2 + $0x20] sm:$0xff]
    %v19 = vld [vmem:[%s2 + $0x28] sm:$0xff]
    %v20 = vld [vmem:[%s2 + $0x30] sm:$0xff]
    %v21 = vld [vmem:[%s2 + $0x38] sm:$0xff]
    %v22 = vld [vmem:[%s2 + $0x40] sm:$0xff]
    %v23 = vld [vmem:[%s2 + $0x18] sm:$0x1]
    %v24 = vld [vmem:[%s2 + $0x19] sm:$0x1]
    %v25 = vld [vmem:[%s2 + $0x1a] sm:$0x1]
    %v26 = vld [vmem:[%s2 + $0x1b] sm:$0x1]
    %v27 = vld [vmem:[%s0] sm:$0xff]
    %v28 = vld [vmem:[%s0 + $0x8] sm:$0xff]
    %v29 = vld [vmem:[%s0 + $0x10] sm:$0xff]
    %v30 = vld [vmem:[%s0 + $0x18] sm:$0xff]
    %v31 = vld [vmem:[%s0 + $0x20] sm:$0xff]
    %v32 = vld [vmem:[%s0 + $0x28] sm:$0xff]
    %v33 = vld [vmem:[%s0 + $0x30] sm:$0xff]
    %v34 = vld [vmem:[%s0 + $0x38] sm:$0xff]
    %v35 = vperm.slane %v23, 0
    %vm36 = vcmask 64512
    %v38 = vsel %vm36, %v27, 0
    %v41 = vsel %vm36, %v28, 0
    %v44 = vsel %vm36, %v29, 0
    %v47 = vsel %vm36, %v30, 0
    %v50 = vsel %vm36, %v31, 0
    %v53 = vsel %vm36, %v32, 0
    %v56 = vsel %vm36, %v33, 0
    %v59 = vsel %vm36, %v34, 0
    %61 = vmatpush.msra.mxu0 0.0
    %62 = vmatpush.msra.mxu0 0.0
    %63 = vmatpush.msra.mxu0 0.0
    %64 = vmatpush.msra.mxu0 0.0
    %65 = vmatpush.msra.mxu0 0.0
    %66 = vmatpush.msra.mxu0 0.0
    %67 = vmatpush.msra.mxu0 0.0
    %68 = vmatpush.msra.mxu0 0.0
    %69 = vmatpush.msra.mxu0 0.0
    %70 = vmatpush.msra.mxu0 0.0
    %71 = vmatpush.msra.mxu0 0.0
    %72 = vmatpush.msra.mxu0 0.0
    %73 = vmatpush.msra.mxu0 0.0
    %74 = vmatpush.msra.mxu0 0.0
    %75 = vmatpush.msra.mxu0 0.0
    %76 = vmatpush.msra.mxu0 %v15
    %77 = vmatmul.f32.gmra.mxu0 %v38
    %v78 = vpop.f32.mrf.mxu0
    %v79 = vadd.f32 %v35, %v78
    %80 = vmatmul.f32.gmra.mxu0 %v41
    %v81 = vpop.f32.mrf.mxu0
    %v82 = vadd.f32 %v35, %v81
    %83 = vmatmul.f32.gmra.mxu0 %v44
    %v84 = vpop.f32.mrf.mxu0
    %v85 = vadd.f32 %v35, %v84
    %86 = vmatmul.f32.gmra.mxu0 %v47
    %v87 = vpop.f32.mrf.mxu0
    %v88 = vadd.f32 %v35, %v87
    %89 = vmatmul.f32.gmra.mxu0 %v50
    %v90 = vpop.f32.mrf.mxu0
    %v91 = vadd.f32 %v35, %v90
    %92 = vmatmul.f32.gmra.mxu0 %v53
    %v93 = vpop.f32.mrf.mxu0
    %v94 = vadd.f32 %v35, %v93
    %95 = vmatmul.f32.gmra.mxu0 %v56
    %v96 = vpop.f32.mrf.mxu0
    %v97 = vadd.f32 %v35, %v96
    %98 = vmatmul.f32.gmra.mxu0 %v59
    %v99 = vpop.f32.mrf.mxu0
    %v100 = vadd.f32 %v35, %v99
    %101 = vdwg.mxu0
    %v102 = vlaneseq
    %v103 = vand.u32 %v102, 127
    %vm104 = vcmp.lt.s32.totalorder %v103, 8
    %v105 = vsel %vm104, %v79, 0.0
    %v106 = vtanh.pop %v105
    %vm107 = vcmask 130048
    %v109 = vsel %vm107, %v106, 0
    %111 = vmatpush.msra.mxu0 0.0
    %112 = vmatpush.msra.mxu0 0.0
    %113 = vmatpush.msra.mxu0 0.0
    %114 = vmatpush.msra.mxu0 0.0
    %115 = vmatpush.msra.mxu0 0.0
    %116 = vmatpush.msra.mxu0 0.0
    %117 = vmatpush.msra.mxu0 0.0
    %118 = vmatpush.msra.mxu0 0.0
    %119 = vmatpush.msra.mxu0 0.0
    %120 = vmatpush.msra.mxu0 0.0
    %121 = vmatpush.msra.mxu0 0.0
    %122 = vmatpush.msra.mxu0 0.0
    %123 = vmatpush.msra.mxu0 0.0
    %124 = vmatpush.msra.mxu0 0.0
    %125 = vmatpush.msra.mxu0 %v17
    %126 = vmatpush.msra.mxu0 %v16
    %127 = vmatmul.f32.gmra.mxu0 %v109
    %v128 = vpop.f32.mrf.mxu0
    %v129 = vadd.f32 %v82, %v128
    %130 = vdwg.mxu0
    %v131 = vtanh.pop %v129
    %v133 = vsel %vm107, %v131, 0
    %135 = vmatpush.msra.mxu0 0.0
    %136 = vmatpush.msra.mxu0 0.0
    %137 = vmatpush.msra.mxu0 0.0
    %138 = vmatpush.msra.mxu0 0.0
    %139 = vmatpush.msra.mxu0 0.0
    %140 = vmatpush.msra.mxu0 0.0
    %141 = vmatpush.msra.mxu0 0.0
    %142 = vmatpush.msra.mxu0 0.0
    %143 = vmatpush.msra.mxu0 0.0
    %144 = vmatpush.msra.mxu0 0.0
    %145 = vmatpush.msra.mxu0 0.0
    %146 = vmatpush.msra.mxu0 0.0
    %147 = vmatpush.msra.mxu0 0.0
    %148 = vmatpush.msra.mxu0 0.0
    %149 = vmatpush.msra.mxu0 %v17
    %150 = vmatpush.msra.mxu0 %v16
    %151 = vmatmul.f32.gmra.mxu0 %v133
    %v152 = vpop.f32.mrf.mxu0
    %v153 = vadd.f32 %v85, %v152
    %154 = vdwg.mxu0
    %v155 = vtanh.pop %v153
    %v157 = vsel %vm107, %v155, 0
    %159 = vmatpush.msra.mxu0 0.0
    %160 = vmatpush.msra.mxu0 0.0
    %161 = vmatpush.msra.mxu0 0.0
    %162 = vmatpush.msra.mxu0 0.0
    %163 = vmatpush.msra.mxu0 0.0
    %164 = vmatpush.msra.mxu0 0.0
    %165 = vmatpush.msra.mxu0 0.0
    %166 = vmatpush.msra.mxu0 0.0
    %167 = vmatpush.msra.mxu0 0.0
    %168 = vmatpush.msra.mxu0 0.0
    %169 = vmatpush.msra.mxu0 0.0
    %170 = vmatpush.msra.mxu0 0.0
    %171 = vmatpush.msra.mxu0 0.0
    %172 = vmatpush.msra.mxu0 0.0
    %173 = vmatpush.msra.mxu0 %v17
    %174 = vmatpush.msra.mxu0 %v16
    %175 = vmatmul.f32.gmra.mxu0 %v157
    %v176 = vpop.f32.mrf.mxu0
    %v177 = vadd.f32 %v88, %v176
    %178 = vdwg.mxu0
    %v179 = vtanh.pop %v177
    %v181 = vsel %vm107, %v179, 0
    %183 = vmatpush.msra.mxu0 0.0
    %184 = vmatpush.msra.mxu0 0.0
    %185 = vmatpush.msra.mxu0 0.0
    %186 = vmatpush.msra.mxu0 0.0
    %187 = vmatpush.msra.mxu0 0.0
    %188 = vmatpush.msra.mxu0 0.0
    %189 = vmatpush.msra.mxu0 0.0
    %190 = vmatpush.msra.mxu0 0.0
    %191 = vmatpush.msra.mxu0 0.0
    %192 = vmatpush.msra.mxu0 0.0
    %193 = vmatpush.msra.mxu0 0.0
    %194 = vmatpush.msra.mxu0 0.0
    %195 = vmatpush.msra.mxu0 0.0
    %196 = vmatpush.msra.mxu0 0.0
    %197 = vmatpush.msra.mxu0 %v17
    %198 = vmatpush.msra.mxu0 %v16
    %199 = vmatmul.f32.gmra.mxu0 %v181
    %v200 = vpop.f32.mrf.mxu0
    %v201 = vadd.f32 %v91, %v200
    %202 = vdwg.mxu0
    %v203 = vtanh.pop %v201
    %v205 = vsel %vm107, %v203, 0
    %207 = vmatpush.msra.mxu0 0.0
    %208 = vmatpush.msra.mxu0 0.0
    %209 = vmatpush.msra.mxu0 0.0
    %210 = vmatpush.msra.mxu0 0.0
    %211 = vmatpush.msra.mxu0 0.0
    %212 = vmatpush.msra.mxu0 0.0
    %213 = vmatpush.msra.mxu0 0.0
    %214 = vmatpush.msra.mxu0 0.0
    %215 = vmatpush.msra.mxu0 0.0
    %216 = vmatpush.msra.mxu0 0.0
    %217 = vmatpush.msra.mxu0 0.0
    %218 = vmatpush.msra.mxu0 0.0
    %219 = vmatpush.msra.mxu0 0.0
    %220 = vmatpush.msra.mxu0 0.0
    %221 = vmatpush.msra.mxu0 %v17
    %222 = vmatpush.msra.mxu0 %v16
    %223 = vmatmul.f32.gmra.mxu0 %v205
    %v224 = vpop.f32.mrf.mxu0
    %v225 = vadd.f32 %v94, %v224
    %226 = vdwg.mxu0
    %v227 = vtanh.pop %v225
    %v229 = vsel %vm107, %v227, 0
    %231 = vmatpush.msra.mxu0 0.0
    %232 = vmatpush.msra.mxu0 0.0
    %233 = vmatpush.msra.mxu0 0.0
    %234 = vmatpush.msra.mxu0 0.0
    %235 = vmatpush.msra.mxu0 0.0
    %236 = vmatpush.msra.mxu0 0.0
    %237 = vmatpush.msra.mxu0 0.0
    %238 = vmatpush.msra.mxu0 0.0
    %239 = vmatpush.msra.mxu0 0.0
    %240 = vmatpush.msra.mxu0 0.0
    %241 = vmatpush.msra.mxu0 0.0
    %242 = vmatpush.msra.mxu0 0.0
    %243 = vmatpush.msra.mxu0 0.0
    %244 = vmatpush.msra.mxu0 0.0
    %245 = vmatpush.msra.mxu0 %v17
    %246 = vmatpush.msra.mxu0 %v16
    %247 = vmatmul.f32.gmra.mxu0 %v229
    %v248 = vpop.f32.mrf.mxu0
    %v249 = vadd.f32 %v97, %v248
    %250 = vdwg.mxu0
    %v251 = vtanh.pop %v249
    %v253 = vsel %vm107, %v251, 0
    %255 = vmatpush.msra.mxu0 0.0
    %256 = vmatpush.msra.mxu0 0.0
    %257 = vmatpush.msra.mxu0 0.0
    %258 = vmatpush.msra.mxu0 0.0
    %259 = vmatpush.msra.mxu0 0.0
    %260 = vmatpush.msra.mxu0 0.0
    %261 = vmatpush.msra.mxu0 0.0
    %262 = vmatpush.msra.mxu0 0.0
    %263 = vmatpush.msra.mxu0 0.0
    %264 = vmatpush.msra.mxu0 0.0
    %265 = vmatpush.msra.mxu0 0.0
    %266 = vmatpush.msra.mxu0 0.0
    %267 = vmatpush.msra.mxu0 0.0
    %268 = vmatpush.msra.mxu0 0.0
    %269 = vmatpush.msra.mxu0 %v17
    %270 = vmatpush.msra.mxu0 %v16
    %271 = vmatmul.f32.gmra.mxu0 %v253
    %v272 = vpop.f32.mrf.mxu0
    %v273 = vadd.f32 %v100, %v272
    %274 = vdwg.mxu0
    %v275 = vtanh.pop %v273
    %v277 = vsel %vm107, %v275, 0
    %279 = vmatpush.msra.mxu0 0.0
    %280 = vmatpush.msra.mxu0 0.0
    %281 = vmatpush.msra.mxu0 0.0
    %282 = vmatpush.msra.mxu0 0.0
    %283 = vmatpush.msra.mxu0 0.0
    %284 = vmatpush.msra.mxu0 0.0
    %285 = vmatpush.msra.mxu0 0.0
    %286 = vmatpush.msra.mxu0 0.0
    %287 = vmatpush.msra.mxu0 0.0
    %288 = vmatpush.msra.mxu0 0.0
    %289 = vmatpush.msra.mxu0 0.0
    %290 = vmatpush.msra.mxu0 0.0
    %291 = vmatpush.msra.mxu0 0.0
    %292 = vmatpush.msra.mxu0 0.0
    %293 = vmatpush.msra.mxu0 %v17
    %294 = vmatpush.msra.mxu0 %v16
    %295 = vmatmul.f32.gmra.mxu0 %v277
    %v296 = vpop.f32.mrf.mxu0
    %v297 = vadd.f32 %v100, %v296
    %298 = vdwg.mxu0
    %v299 = vtanh.pop %v297
    %v300 = vld [vmem:[%s1] sm:$0xff]
    %301 = vset.pattern.permute.xlu0 0
    %302 = vperm.xlu0 %301, %v300
    %v303 = vpop.permute.xlu0 %302
    %vm304 = vcmp.eq.s32.totalorder %v103, %v303
    %v305 = vsel %vm304, 1, 0
    %v306 = vcvt.s32.f32 %v305
    %308 = vrot.lane.b32.xlu0 %v306, 16
    %v309 = vpop.permute.xlu0 %308
    %v311 = vsel %vm107, %v299, %v309
    %v312 = vperm.slane %v24, 0
    %vm313 = vcmask 195584
    %v315 = vsel %vm313, %v311, 0
    %317 = vmatpush.msra.mxu0 0.0
    %318 = vmatpush.msra.mxu0 0.0
    %319 = vmatpush.msra.mxu0 0.0
    %320 = vmatpush.msra.mxu0 0.0
    %321 = vmatpush.msra.mxu0 0.0
    %322 = vmatpush.msra.mxu0 0.0
    %323 = vmatpush.msra.mxu0 0.0
    %324 = vmatpush.msra.mxu0 0.0
    %325 = vmatpush.msra.mxu0 0.0
    %326 = vmatpush.msra.mxu0 0.0
    %327 = vmatpush.msra.mxu0 0.0
    %328 = vmatpush.msra.mxu0 0.0
    %329 = vmatpush.msra.mxu0 0.0
    %330 = vmatpush.msra.mxu0 %v20
    %331 = vmatpush.msra.mxu0 %v19
    %332 = vmatpush.msra.mxu0 %v18
    %333 = vmatmul.f32.gmra.mxu0 %v315
    %v334 = vpop.f32.mrf.mxu0
    %v335 = vadd.f32 %v312, %v334
    %336 = vdwg.mxu0
    %v337 = vmax.f32 %v335, 0.0
    %v338 = vperm.slane %v25, 0
    %v340 = vsel %vm36, %v337, 0
    %342 = vmatpush.msra.mxu0 0.0
    %343 = vmatpush.msra.mxu0 0.0
    %344 = vmatpush.msra.mxu0 0.0
    %345 = vmatpush.msra.mxu0 0.0
    %346 = vmatpush.msra.mxu0 0.0
    %347 = vmatpush.msra.mxu0 0.0
    %348 = vmatpush.msra.mxu0 0.0
    %349 = vmatpush.msra.mxu0 0.0
    %350 = vmatpush.msra.mxu0 0.0
    %351 = vmatpush.msra.mxu0 0.0
    %352 = vmatpush.msra.mxu0 0.0
    %353 = vmatpush.msra.mxu0 0.0
    %354 = vmatpush.msra.mxu0 0.0
    %355 = vmatpush.msra.mxu0 0.0
    %356 = vmatpush.msra.mxu0 0.0
    %357 = vmatpush.msra.mxu0 %v21
    %358 = vmatmul.f32.gmra.mxu0 %v340
    %v359 = vpop.f32.mrf.mxu0
    %v360 = vadd.f32 %v338, %v359
    %361 = vdwg.mxu0
    %v362 = vmax.f32 %v360, 0.0
    %v363 = vperm.slane %v26, 0
    %v365 = vsel %vm36, %v362, 0
    %367 = vmatpush.msra.mxu0 0.0
    %368 = vmatpush.msra.mxu0 0.0
    %369 = vmatpush.msra.mxu0 0.0
    %370 = vmatpush.msra.mxu0 0.0
    %371 = vmatpush.msra.mxu0 0.0
    %372 = vmatpush.msra.mxu0 0.0
    %373 = vmatpush.msra.mxu0 0.0
    %374 = vmatpush.msra.mxu0 0.0
    %375 = vmatpush.msra.mxu0 0.0
    %376 = vmatpush.msra.mxu0 0.0
    %377 = vmatpush.msra.mxu0 0.0
    %378 = vmatpush.msra.mxu0 0.0
    %379 = vmatpush.msra.mxu0 0.0
    %380 = vmatpush.msra.mxu0 0.0
    %381 = vmatpush.msra.mxu0 0.0
    %382 = vmatpush.msra.mxu0 %v22
    %383 = vmatmul.f32.gmra.mxu0 %v365
    %v384 = vpop.f32.mrf.mxu0
    %v385 = vadd.f32 %v363, %v384
    %386 = vdwg.mxu0
    %387 = vst.msk [vmem:[#allocation2] sm:$0xff] %vm36, %v385
    // Predicated region
    $region14: #{tpu_custom_call.1} parent=1 // pred_check
      _
    $region15: #{tpu_custom_call.1} parent=1 // pred_check_branch
      %389 = sbr.rel (0) target = $region17
    $region16: #{tpu_custom_call.1} parent=1 // pred_region
      %391 = vsyncadd [#allocation3], 0
      %s393 = sshll.u32 [#allocation2], 4
      %s394 = int_to_ptr.vmem [resolvable:$true] %s393
      %s395 = sshll.u32 %s3, 4
      %s396 = int_to_ptr.hbm [resolvable:$true] %s395
      %398 = dma.vmem_to_hbm [thread:$0]  %s394, 128, %s396, [#allocation3]
    $region17: #{tpu_custom_call.1} parent=1 // pred_fallthru
      _
    // Predicated region
    $region18: #{tpu_custom_call.1} parent=1 // pred_check
      _
    $region19: #{tpu_custom_call.1} parent=1 // pred_check_branch
      %400 = sbr.rel (0) target = $region21
    $region20: #{tpu_custom_call.1} parent=1 // pred_region
      %402 = dma.done [#allocation3], 128
    $region21: #{tpu_custom_call.1} parent=1 // pred_fallthru
      _
    %403 = vsyncpa [#allocation3], 1

</llo_original>
